<compile_context>
chip_gen: v7x
topology: tpu7x:2x2x1
jax: 0.10.0
libtpu: 0.0.40
codegen_flags: <defaults>
</compile_context>

<pallas_src>
import functools

import jax
import jax.numpy as jnp
from jax.experimental import pallas as pl
from jax.experimental.pallas import tpu as pltpu

EPS = 1e-5          # PyTorch BatchNorm1d default eps
NEG_SLOPE = 0.2     # LeakyReLU negative slope

# Column indices inside the packed per-feature parameter slab.
_B1, _G2, _BE2, _G3, _BE3, _W4, _B4, _PAD = range(8)


def _leaky_relu(x):
    # mul + max (2 ops/elem) instead of cmp + select + mul (3 ops/elem).
    return jnp.maximum(x, NEG_SLOPE * x)


def discriminator_kernel(x_ref, w1_ref, w2_ref, w3_ref, p_ref, out_ref, *,
                         inv_b, feature_major):
    mm_dtype = w1_ref.dtype            # matmul operand dtype (f32 or bf16)
    x = x_ref[...]                     # always (B, E) as handed by the wrapper
    if x.dtype != mm_dtype:
        x = x.astype(mm_dtype)

    p = p_ref[...]                     # (E, 8) feature-major / (8, E) batch-major

    if feature_major:
        def pcol(k):                   # per-feature column, broadcasts over lanes
            return p[:, k:k + 1]       # (E, 1)
        b4 = p[0:1, _B4:_B4 + 1]       # (1, 1)
        bn_axis = 1                    # batch lives on the lane axis
        feat_axis_h = 0                # activations are (E, B)
    else:
        def pcol(k):                   # per-feature row, broadcasts over sublanes
            return p[k:k + 1, :]       # (1, E)
        b4 = p[_B4:_B4 + 1, 0:1]       # (1, 1)
        bn_axis = 0                    # batch lives on the sublane axis
        feat_axis_h = 1                # activations are (B, E)

    def mm(w_ref, h, h_feat_axis):
        # Linear layer with PyTorch (out, in) weight layout: contract the
        # feature axis of h against w's `in` axis.  No wrapper transpose.
        if h.dtype != mm_dtype:
            h = h.astype(mm_dtype)
        w = w_ref[...]
        if feature_major:
            dn = (((1,), (h_feat_axis,)), ((), ()))
            return jax.lax.dot_general(w, h, dn,
                                       preferred_element_type=jnp.float32)
        dn = (((h_feat_axis,), (1,)), ((), ()))
        return jax.lax.dot_general(h, w, dn,
                                   preferred_element_type=jnp.float32)

    def bn(h, gamma, beta):
        # Fused training-mode BatchNorm1d over the batch axis: one pass for
        # s1/s2, pre-folded scale & shift -> one mul + one add per element.
        # (Linear biases feeding a BN are algebraically dead and never shipped.)
        s1 = jnp.sum(h, axis=bn_axis, keepdims=True)
        s2 = jnp.sum(h * h, axis=bn_axis, keepdims=True)
        mean = s1 * inv_b
        var = s2 * inv_b - mean * mean          # biased variance
        scale = gamma * jax.lax.rsqrt(var + EPS)
        shift = beta - mean * scale
        return h * scale + shift

    # Block 1: Linear + LeakyReLU        (x arrives as (B, E): feature axis 1)
    h = _leaky_relu(mm(w1_ref, x, 1) + pcol(_B1))

    # Block 2: Linear + BatchNorm1d + LeakyReLU   (bias absorbed by BN)
    h = _leaky_relu(bn(mm(w2_ref, h, feat_axis_h), pcol(_G2), pcol(_BE2)))

    # Block 3: Linear + BatchNorm1d + LeakyReLU   (bias absorbed by BN)
    h = _leaky_relu(bn(mm(w3_ref, h, feat_axis_h), pcol(_G3), pcol(_BE3)))

    # Head Linear(E, 1): VPU multiply + cross-feature reduction (keeps the MXU
    # out of an N=1 matmul).  Feature-major -> lane-dense (1, B) store.
    y = jnp.sum(h * pcol(_W4), axis=feat_axis_h, keepdims=True) + b4
    out_ref[...] = y


def _padded_tile_bytes(rows, cols, itemsize):
    """VMEM footprint of a 2-D array including (8, 128) tile padding."""
    return (-(-rows // 8) * 8) * (-(-cols // 128) * 128) * itemsize


def _vmem_capacity_bytes():
    try:
        return int(pltpu.get_tpu_info().vmem_capacity_bytes)
    except Exception:
        return 64 * 1024 * 1024        # conservative: v7x per-TensorCore VMEM


def discriminator_forward(x, params, *, feature_major=None, matmul_dtype=None):
    B, E = x.shape

    # Layout by batch size: batch-major at small B (don't waste 120/128 lanes),
    # feature-major (batch on lanes, lane-dense output) once B fills 128 lanes.
    if feature_major is None:
        feature_major = B >= 128
    # bf16 MXU operands once the matmuls actually matter; f32 at tiny E.
    if matmul_dtype is None:
        matmul_dtype = jnp.bfloat16 if E >= 256 else jnp.float32

    w1 = params["w1"].astype(matmul_dtype)
    w2 = params["w2"].astype(matmul_dtype)
    w3 = params["w3"].astype(matmul_dtype)
    pvec = params["pvec"] if feature_major else params["pvec"].T   # tiny (E,8)

    act_shape = (E, B) if feature_major else (B, E)
    out_shape = (1, B) if feature_major else (B, 1)
    mm_bytes = jnp.dtype(matmul_dtype).itemsize

    # Generation-aware VMEM guard (includes lane/sublane tile padding).
    vmem_cap = _vmem_capacity_bytes()
    vmem_limit = int(min(vmem_cap, 128 * 1024 * 1024) * 3) // 4
    footprint = (_padded_tile_bytes(B, E, 4)                        # x
                 + 3 * _padded_tile_bytes(E, E, mm_bytes)           # weights
                 + _padded_tile_bytes(*pvec.shape, 4)               # param slab
                 + _padded_tile_bytes(*out_shape, 4)                # output
                 + 6 * _padded_tile_bytes(*act_shape, 4))           # live acts
    assert footprint <= vmem_limit, (
        f"VMEM footprint {footprint}B > limit {vmem_limit}B; this "
        "full-residency BatchNorm kernel needs a batch grid + two-pass BN")
    # TODO(synk): batch-chunk 'parallel' grid + two-pass BN stats for large B.

    flops = 6 * B * E * E + 18 * B * E
    bytes_accessed = B * E * 4 + 3 * E * E * mm_bytes + E * 8 * 4 + B * 4
    cost = pl.CostEstimate(flops=flops, transcendentals=2 * E,
                           bytes_accessed=bytes_accessed)

    vmem_spec = pl.BlockSpec(memory_space=pltpu.MemorySpace.VMEM)
    out = pl.pallas_call(
        functools.partial(discriminator_kernel, inv_b=1.0 / B,
                          feature_major=feature_major),
        out_shape=jax.ShapeDtypeStruct(out_shape, jnp.float32),
        in_specs=[vmem_spec] * 5,
        out_specs=vmem_spec,
        cost_estimate=cost,
        compiler_params=pltpu.CompilerParams(vmem_limit_bytes=vmem_limit),
    )(x, w1, w2, w3, pvec)
    return jnp.squeeze(out)            # matches torch.squeeze -> (B,)


def init_params(key, enc_dim):
    ks = jax.random.split(key, 8)
    s = 1.0 / float(enc_dim) ** 0.5

    def lin(kw, kb, din, dout):
        # PyTorch layout: weight (out, in), bias (out,).
        w = jax.random.uniform(kw, (dout, din), jnp.float32, -s, s)
        b = jax.random.uniform(kb, (dout,), jnp.float32, -s, s)
        return w, b

    w1, b1 = lin(ks[0], ks[1], enc_dim, enc_dim)
    w2, b2 = lin(ks[2], ks[3], enc_dim, enc_dim)
    w3, b3 = lin(ks[4], ks[5], enc_dim, enc_dim)
    w4, b4 = lin(ks[6], ks[7], enc_dim, 1)            # w4: (1, E), b4: (1,)

    g2 = jnp.ones((enc_dim,), jnp.float32)
    be2 = jnp.zeros((enc_dim,), jnp.float32)
    g3 = jnp.ones((enc_dim,), jnp.float32)
    be3 = jnp.zeros((enc_dim,), jnp.float32)

    # Packed per-feature slab (feature-major orientation, (E, 8) f32).
    # b2/b3 are intentionally NOT packed: a Linear bias feeding BatchNorm is
    # algebraically a no-op, so the kernel never sees them.
    pvec = jnp.stack(
        [b1, g2, be2, g3, be3, w4[0],
         jnp.full((enc_dim,), b4[0], jnp.float32),
         jnp.zeros((enc_dim,), jnp.float32)], axis=1)

    return dict(w1=w1, w2=w2, w3=w3, pvec=pvec,
                # Raw params kept only for the pure-JAX reference (note b2/b3).
                b1=b1, b2=b2, b3=b3, b4=b4, w4=w4,
                g2=g2, be2=be2, g3=g3, be3=be3)


def reference_forward(x, p):
    # Independent batch-major pure-JAX reference with full PyTorch semantics
    # (INCLUDING the b2/b3 biases the kernel provably does not need).
    def bn(h, g, b):
        m = jnp.mean(h, axis=0, keepdims=True)
        v = jnp.mean((h - m) ** 2, axis=0, keepdims=True)
        return (h - m) * jax.lax.rsqrt(v + EPS) * g + b

    def lrelu(t):
        return jnp.where(t > 0, t, NEG_SLOPE * t)

    h = lrelu(x @ p["w1"].T + p["b1"])
    h = lrelu(bn(h @ p["w2"].T + p["b2"], p["g2"], p["be2"]))
    h = lrelu(bn(h @ p["w3"].T + p["b3"], p["g3"], p["be3"]))
    return jnp.squeeze(h @ p["w4"].T + p["b4"])


if __name__ == "__main__":
    B, ENC_DIM = 8, 32
    key = jax.random.PRNGKey(0)
    kx, kp = jax.random.split(key)
    x = jax.random.normal(kx, (B, ENC_DIM), jnp.float32)
    params = init_params(kp, ENC_DIM)

    ref = reference_forward(x, params)

    # Auto layout (batch-major at B=8).
    out_bm = jax.block_until_ready(discriminator_forward(x, params))
    # Also exercise the feature-major (large-batch) code path.
    out_fm = jax.block_until_ready(
        discriminator_forward(x, params, feature_major=True))

    assert out_bm.shape == (B,), out_bm.shape
    assert out_fm.shape == (B,), out_fm.shape
    assert jnp.allclose(out_bm, ref, rtol=1e-3, atol=1e-3), (out_bm, ref)
    assert jnp.allclose(out_fm, ref, rtol=1e-3, atol=1e-3), (out_fm, ref)
    print("KERNEL_OK")
</pallas_src>

<mosaic_0001>
module attributes {stable_mosaic.version = 11 : i64} {
  func.func @discriminator_kernel(%arg0: memref<8x32xf32, #tpu.memory_space<vmem>>, %arg1: memref<32x32xf32, #tpu.memory_space<vmem>>, %arg2: memref<32x32xf32, #tpu.memory_space<vmem>>, %arg3: memref<32x32xf32, #tpu.memory_space<vmem>>, %arg4: memref<8x32xf32, #tpu.memory_space<vmem>>, %arg5: memref<8x1xf32, #tpu.memory_space<vmem>>) attributes {dimension_semantics = [], scalar_prefetch = 0 : i64, scratch_operands = 0 : i64, tpu.core_type = #tpu.core_type<tc>} {
    %c0 = arith.constant 0 : index
    %c0_0 = arith.constant 0 : index
    %0 = vector.load %arg0[%c0, %c0_0] : memref<8x32xf32, #tpu.memory_space<vmem>>, vector<8x32xf32>
    %c0_1 = arith.constant 0 : index
    %c0_2 = arith.constant 0 : index
    %1 = vector.load %arg4[%c0_1, %c0_2] : memref<8x32xf32, #tpu.memory_space<vmem>>, vector<8x32xf32>
    %2 = vector.extract_strided_slice %1 {offsets = [6, 0], sizes = [1, 1], strides = [1, 1]} : vector<8x32xf32> to vector<1x1xf32>
    %c0_3 = arith.constant 0 : index
    %c0_4 = arith.constant 0 : index
    %3 = vector.load %arg1[%c0_3, %c0_4] : memref<32x32xf32, #tpu.memory_space<vmem>>, vector<32x32xf32>
    %cst = arith.constant dense<0.000000e+00> : vector<8x32xf32>
    %4 = tpu.matmul %0, %3, %cst {dimension_numbers = #tpu.dot_dimension_numbers<[1], [1], [0], [0], [0, 0, 1, 0], [], []>} : vector<8x32xf32>, vector<32x32xf32>, vector<8x32xf32> -> vector<8x32xf32>
    %5 = vector.extract_strided_slice %1 {offsets = [0, 0], sizes = [1, 32], strides = [1, 1]} : vector<8x32xf32> to vector<1x32xf32>
    %6 = vector.broadcast %5 : vector<1x32xf32> to vector<8x32xf32>
    %7 = arith.addf %4, %6 : vector<8x32xf32>
    %cst_5 = arith.constant 2.000000e-01 : f32
    %8 = vector.broadcast %cst_5 : f32 to vector<8x32xf32>
    %9 = arith.mulf %8, %7 : vector<8x32xf32>
    %10 = arith.maximumf %7, %9 : vector<8x32xf32>
    %c0_6 = arith.constant 0 : index
    %c0_7 = arith.constant 0 : index
    %11 = vector.load %arg2[%c0_6, %c0_7] : memref<32x32xf32, #tpu.memory_space<vmem>>, vector<32x32xf32>
    %cst_8 = arith.constant dense<0.000000e+00> : vector<8x32xf32>
    %12 = tpu.matmul %10, %11, %cst_8 {dimension_numbers = #tpu.dot_dimension_numbers<[1], [1], [0], [0], [0, 0, 1, 0], [], []>} : vector<8x32xf32>, vector<32x32xf32>, vector<8x32xf32> -> vector<8x32xf32>
    %13 = vector.extract_strided_slice %1 {offsets = [1, 0], sizes = [1, 32], strides = [1, 1]} : vector<8x32xf32> to vector<1x32xf32>
    %14 = vector.extract_strided_slice %1 {offsets = [2, 0], sizes = [1, 32], strides = [1, 1]} : vector<8x32xf32> to vector<1x32xf32>
    %cst_9 = arith.constant dense<0.000000e+00> : vector<32xf32>
    %15 = vector.multi_reduction <add>, %12, %cst_9 [0] : vector<8x32xf32> to vector<32xf32>
    %16 = vector.shape_cast %15 : vector<32xf32> to vector<1x32xf32>
    %17 = arith.mulf %12, %12 : vector<8x32xf32>
    %cst_10 = arith.constant dense<0.000000e+00> : vector<32xf32>
    %18 = vector.multi_reduction <add>, %17, %cst_10 [0] : vector<8x32xf32> to vector<32xf32>
    %19 = vector.shape_cast %18 : vector<32xf32> to vector<1x32xf32>
    %cst_11 = arith.constant 1.250000e-01 : f32
    %20 = vector.broadcast %cst_11 : f32 to vector<1x32xf32>
    %21 = arith.mulf %16, %20 : vector<1x32xf32>
    %cst_12 = arith.constant 1.250000e-01 : f32
    %22 = vector.broadcast %cst_12 : f32 to vector<1x32xf32>
    %23 = arith.mulf %19, %22 : vector<1x32xf32>
    %24 = arith.mulf %21, %21 : vector<1x32xf32>
    %25 = arith.subf %23, %24 : vector<1x32xf32>
    %cst_13 = arith.constant 9.99999974E-6 : f32
    %26 = vector.broadcast %cst_13 : f32 to vector<1x32xf32>
    %27 = arith.addf %25, %26 : vector<1x32xf32>
    %28 = math.rsqrt %27 : vector<1x32xf32>
    %29 = arith.mulf %13, %28 : vector<1x32xf32>
    %30 = arith.mulf %21, %29 : vector<1x32xf32>
    %31 = arith.subf %14, %30 : vector<1x32xf32>
    %32 = vector.broadcast %29 : vector<1x32xf32> to vector<8x32xf32>
    %33 = arith.mulf %12, %32 : vector<8x32xf32>
    %34 = vector.broadcast %31 : vector<1x32xf32> to vector<8x32xf32>
    %35 = arith.addf %33, %34 : vector<8x32xf32>
    %cst_14 = arith.constant 2.000000e-01 : f32
    %36 = vector.broadcast %cst_14 : f32 to vector<8x32xf32>
    %37 = arith.mulf %36, %35 : vector<8x32xf32>
    %38 = arith.maximumf %35, %37 : vector<8x32xf32>
    %c0_15 = arith.constant 0 : index
    %c0_16 = arith.constant 0 : index
    %39 = vector.load %arg3[%c0_15, %c0_16] : memref<32x32xf32, #tpu.memory_space<vmem>>, vector<32x32xf32>
    %cst_17 = arith.constant dense<0.000000e+00> : vector<8x32xf32>
    %40 = tpu.matmul %38, %39, %cst_17 {dimension_numbers = #tpu.dot_dimension_numbers<[1], [1], [0], [0], [0, 0, 1, 0], [], []>} : vector<8x32xf32>, vector<32x32xf32>, vector<8x32xf32> -> vector<8x32xf32>
    %41 = vector.extract_strided_slice %1 {offsets = [3, 0], sizes = [1, 32], strides = [1, 1]} : vector<8x32xf32> to vector<1x32xf32>
    %42 = vector.extract_strided_slice %1 {offsets = [4, 0], sizes = [1, 32], strides = [1, 1]} : vector<8x32xf32> to vector<1x32xf32>
    %cst_18 = arith.constant dense<0.000000e+00> : vector<32xf32>
    %43 = vector.multi_reduction <add>, %40, %cst_18 [0] : vector<8x32xf32> to vector<32xf32>
    %44 = vector.shape_cast %43 : vector<32xf32> to vector<1x32xf32>
    %45 = arith.mulf %40, %40 : vector<8x32xf32>
    %cst_19 = arith.constant dense<0.000000e+00> : vector<32xf32>
    %46 = vector.multi_reduction <add>, %45, %cst_19 [0] : vector<8x32xf32> to vector<32xf32>
    %47 = vector.shape_cast %46 : vector<32xf32> to vector<1x32xf32>
    %cst_20 = arith.constant 1.250000e-01 : f32
    %48 = vector.broadcast %cst_20 : f32 to vector<1x32xf32>
    %49 = arith.mulf %44, %48 : vector<1x32xf32>
    %cst_21 = arith.constant 1.250000e-01 : f32
    %50 = vector.broadcast %cst_21 : f32 to vector<1x32xf32>
    %51 = arith.mulf %47, %50 : vector<1x32xf32>
    %52 = arith.mulf %49, %49 : vector<1x32xf32>
    %53 = arith.subf %51, %52 : vector<1x32xf32>
    %cst_22 = arith.constant 9.99999974E-6 : f32
    %54 = vector.broadcast %cst_22 : f32 to vector<1x32xf32>
    %55 = arith.addf %53, %54 : vector<1x32xf32>
    %56 = math.rsqrt %55 : vector<1x32xf32>
    %57 = arith.mulf %41, %56 : vector<1x32xf32>
    %58 = arith.mulf %49, %57 : vector<1x32xf32>
    %59 = arith.subf %42, %58 : vector<1x32xf32>
    %60 = vector.broadcast %57 : vector<1x32xf32> to vector<8x32xf32>
    %61 = arith.mulf %40, %60 : vector<8x32xf32>
    %62 = vector.broadcast %59 : vector<1x32xf32> to vector<8x32xf32>
    %63 = arith.addf %61, %62 : vector<8x32xf32>
    %cst_23 = arith.constant 2.000000e-01 : f32
    %64 = vector.broadcast %cst_23 : f32 to vector<8x32xf32>
    %65 = arith.mulf %64, %63 : vector<8x32xf32>
    %66 = arith.maximumf %63, %65 : vector<8x32xf32>
    %67 = vector.extract_strided_slice %1 {offsets = [5, 0], sizes = [1, 32], strides = [1, 1]} : vector<8x32xf32> to vector<1x32xf32>
    %68 = vector.broadcast %67 : vector<1x32xf32> to vector<8x32xf32>
    %69 = arith.mulf %66, %68 : vector<8x32xf32>
    %cst_24 = arith.constant dense<0.000000e+00> : vector<8xf32>
    %70 = vector.multi_reduction <add>, %69, %cst_24 [1] : vector<8x32xf32> to vector<8xf32>
    %71 = vector.shape_cast %70 : vector<8xf32> to vector<8x1xf32>
    %72 = vector.broadcast %2 : vector<1x1xf32> to vector<8x1xf32>
    %73 = arith.addf %71, %72 : vector<8x1xf32>
    %c0_25 = arith.constant 0 : index
    %c0_26 = arith.constant 0 : index
    %74 = vector.load %arg5[%c0_25, %c0_26] : memref<8x1xf32, #tpu.memory_space<vmem>>, vector<8x1xf32>
    tpu.vector_store %arg5[%c0_25, %c0_26], %73 {strides = array<i32>} : memref<8x1xf32, #tpu.memory_space<vmem>>, vector<8x1xf32>,
    return
  }
}

</mosaic_0001>

<llo_original>
// kernel: tpu_custom_call.1
$region0: #{tpu_custom_call.1}
  #allocation0 [shape = 'u32[]', space=smem, size = 0x4, offset = 0x4, fixed_abs, tag = 'smem constant byte address 0x4 - core index']
  #allocation1 [shape = 'u32[144,128]{1,0:T(1,128)}', space=vmem, size = 0x12000, scoped, tag = 'internal scratch']
  %s0 = inlined_call_operand.hbm [shape: f32[8,32], index: 0, kind: input, shape index: {}]
  %s1 = inlined_call_operand.hbm [shape: f32[32,32], index: 1, kind: input, shape index: {}]
  %s2 = inlined_call_operand.hbm [shape: f32[32,32], index: 2, kind: input, shape index: {}]
  %s3 = inlined_call_operand.hbm [shape: f32[32,32], index: 3, kind: input, shape index: {}]
  %s4 = inlined_call_operand.vmem [shape: f32[8,32], index: 4, kind: input, shape index: {}]
  %s5 = inlined_call_operand.vmem [shape: f32[8,1], index: 5, kind: output, shape index: {}]
  %s6 = sld [smem:[#allocation0]]
  $region46: #{tpu_custom_call.1} parent=0
    _
  %s8 = ssub.s32 1, %s6
  %s9 = scalar_select 0, %s8, %s6
  $region1: #{tpu_custom_call.1} parent=0
    #allocation2 [shape = 'u8[4096]{0}', space=vmem, size = 0x1000, scoped, tag = 'input window, operand 0, single buffered']
    #allocation3 [shape = 's32[1]{0}', space=sflag, size = 0x4, scoped, tag = 'scoped memory for tpu_custom_call.1']
    #allocation4 [shape = 'u8[16384]{0}', space=vmem, size = 0x4000, scoped, tag = 'input window, operand 1, single buffered']
    #allocation5 [shape = 's32[1]{0}', space=sflag, size = 0x4, scoped, tag = 'scoped memory for tpu_custom_call.1']
    #allocation6 [shape = 'u8[16384]{0}', space=vmem, size = 0x4000, scoped, tag = 'input window, operand 2, single buffered']
    #allocation7 [shape = 'u8[16384]{0}', space=vmem, size = 0x4000, scoped, tag = 'input window, operand 3, single buffered']
    #allocation8 [shape = 's32[1]{0}', space=sflag, size = 0x4, scoped, tag = 'scoped memory for tpu_custom_call.1']
    %10 = vsyncpa [#allocation3], 0
    %11 = vsyncpa [#allocation5], 0
    %12 = vsyncpa [#allocation8], 0
    // Predicated region
    $region2: #{tpu_custom_call.1} parent=1 // pred_check
      _
    $region3: #{tpu_custom_call.1} parent=1 // pred_check_branch
      %14 = sbr.rel (0) target = $region5
    $region4: #{tpu_custom_call.1} parent=1 // pred_region
      %s16 = ssub.s32 128, 128
      %17 = vsyncadd [#allocation3], %s16
      %s19 = sshll.u32 [#allocation2], 4
      %s20 = int_to_ptr.vmem [resolvable:$true] %s19
      %22 = dma.hbm_to_vmem [thread:$0]  %s0, 128, %s20, [#allocation3]
    $region5: #{tpu_custom_call.1} parent=1 // pred_fallthru
      _
    // Predicated region
    $region6: #{tpu_custom_call.1} parent=1 // pred_check
      _
    $region7: #{tpu_custom_call.1} parent=1 // pred_check_branch
      %24 = sbr.rel (0) target = $region9
    $region8: #{tpu_custom_call.1} parent=1 // pred_region
      %s26 = ssub.s32 512, 512
      %27 = vsyncadd [#allocation5], %s26
      %s28 = sshll.u32 [#allocation4], 4
      %s29 = int_to_ptr.vmem [resolvable:$true] %s28
      %34 = dma.hbm_to_vmem [thread:$0]  %s1, 512, %s29, [#allocation5], 128, 128, 8
    $region9: #{tpu_custom_call.1} parent=1 // pred_fallthru
      _
    // Predicated region
    $region10: #{tpu_custom_call.1} parent=1 // pred_check
      _
    $region11: #{tpu_custom_call.1} parent=1 // pred_check_branch
      %36 = sbr.rel (0) target = $region13
    $region12: #{tpu_custom_call.1} parent=1 // pred_region
      %s38 = ssub.s32 512, 512
      %39 = vsyncadd [#allocation5], %s38
      %s40 = sshll.u32 [#allocation6], 4
      %s41 = int_to_ptr.vmem [resolvable:$true] %s40
      %46 = dma.hbm_to_vmem [thread:$0]  %s2, 512, %s41, [#allocation5], 128, 128, 8
    $region13: #{tpu_custom_call.1} parent=1 // pred_fallthru
      _
    // Predicated region
    $region14: #{tpu_custom_call.1} parent=1 // pred_check
      _
    $region15: #{tpu_custom_call.1} parent=1 // pred_check_branch
      %48 = sbr.rel (0) target = $region17
    $region16: #{tpu_custom_call.1} parent=1 // pred_region
      %s50 = ssub.s32 512, 512
      %51 = vsyncadd [#allocation8], %s50
      %s52 = sshll.u32 [#allocation7], 4
      %s53 = int_to_ptr.vmem [resolvable:$true] %s52
      %58 = dma.hbm_to_vmem [thread:$0]  %s3, 512, %s53, [#allocation8], 128, 128, 8
    $region17: #{tpu_custom_call.1} parent=1 // pred_fallthru
      _
    // Predicated region
    $region18: #{tpu_custom_call.1} parent=1 // pred_check
      _
    $region19: #{tpu_custom_call.1} parent=1 // pred_check_branch
      %60 = sbr.rel (0) target = $region21
    $region20: #{tpu_custom_call.1} parent=1 // pred_region
      _
    $region21: #{tpu_custom_call.1} parent=1 // pred_fallthru
      _
    // Predicated region
    $region22: #{tpu_custom_call.1} parent=1 // pred_check
      _
    $region23: #{tpu_custom_call.1} parent=1 // pred_check_branch
      %62 = sbr.rel (0) target = $region25
    $region24: #{tpu_custom_call.1} parent=1 // pred_region
      %63 = dma.done [#allocation3], 128
    $region25: #{tpu_custom_call.1} parent=1 // pred_fallthru
      _
    // Predicated region
    $region26: #{tpu_custom_call.1} parent=1 // pred_check
      _
    $region27: #{tpu_custom_call.1} parent=1 // pred_check_branch
      %65 = sbr.rel (0) target = $region29
    $region28: #{tpu_custom_call.1} parent=1 // pred_region
      %66 = dma.done [#allocation5], 512
    $region29: #{tpu_custom_call.1} parent=1 // pred_fallthru
      _
    // Predicated region
    $region30: #{tpu_custom_call.1} parent=1 // pred_check
      _
    $region31: #{tpu_custom_call.1} parent=1 // pred_check_branch
      %68 = sbr.rel (0) target = $region33
    $region32: #{tpu_custom_call.1} parent=1 // pred_region
      %69 = dma.done [#allocation5], 512
    $region33: #{tpu_custom_call.1} parent=1 // pred_fallthru
      _
    // Predicated region
    $region34: #{tpu_custom_call.1} parent=1 // pred_check
      _
    $region35: #{tpu_custom_call.1} parent=1 // pred_check_branch
      %71 = sbr.rel (0) target = $region37
    $region36: #{tpu_custom_call.1} parent=1 // pred_region
      %72 = dma.done [#allocation8], 512
    $region37: #{tpu_custom_call.1} parent=1 // pred_fallthru
      _
    %v73 = vld [vmem:[#allocation2] sm:$0xff]
    %v74 = vld [vmem:[%s4] sm:$0xff]
    %v75 = vld [vmem:[#allocation4] sm:$0xff]
    %v76 = vld [vmem:[#allocation4 + $0x8] sm:$0xff]
    %v77 = vld [vmem:[#allocation4 + $0x10] sm:$0xff]
    %v78 = vld [vmem:[#allocation4 + $0x18] sm:$0xff]
    %v79 = vlaneseq
    %v80 = vshrl.u32 %v79, 7
    %v81 = vsub.s32 0, %v80
    %v82 = vrot.slane %v74, %v81
    %vm83 = vcmask 261120
    %v85 = vsel %vm83, %v73, 0
    %v88 = vsel %vm83, %v75, 0
    %v91 = vsel %vm83, %v76, 0
    %v94 = vsel %vm83, %v77, 0
    %v97 = vsel %vm83, %v78, 0
    %99 = vmatprep.subr.mxu0 0.0
    %100 = vmatpush1.xpose.msra.mxu0 %v88
    %101 = vmatprep.subr.mxu0 0.0
    %102 = vmatpush1.xpose.msra.mxu0 %v91
    %103 = vmatprep.subr.mxu0 0.0
    %104 = vmatpush1.xpose.msra.mxu0 %v94
    %105 = vmatprep.subr.mxu0 0.0
    %106 = vmatpush1.xpose.msra.mxu0 %v97
    %107 = vmatprep.subr.mxu0 0.0
    %108 = vmatpush1.xpose.msra.mxu0 0.0
    %109 = vmatprep.subr.mxu0 0.0
    %110 = vmatpush1.xpose.msra.mxu0 0.0
    %111 = vmatprep.subr.mxu0 0.0
    %112 = vmatpush1.xpose.msra.mxu0 0.0
    %113 = vmatprep.subr.mxu0 0.0
    %114 = vmatpush1.xpose.msra.mxu0 0.0
    %115 = vmatprep.subr.mxu0 0.0
    %116 = vmatpush1.xpose.msra.mxu0 0.0
    %117 = vmatprep.subr.mxu0 0.0
    %118 = vmatpush1.xpose.msra.mxu0 0.0
    %119 = vmatprep.subr.mxu0 0.0
    %120 = vmatpush1.xpose.msra.mxu0 0.0
    %121 = vmatprep.subr.mxu0 0.0
    %122 = vmatpush1.xpose.msra.mxu0 0.0
    %123 = vmatprep.subr.mxu0 0.0
    %124 = vmatpush1.xpose.msra.mxu0 0.0
    %125 = vmatprep.subr.mxu0 0.0
    %126 = vmatpush1.xpose.msra.mxu0 0.0
    %127 = vmatprep.subr.mxu0 0.0
    %128 = vmatpush1.xpose.msra.mxu0 0.0
    %129 = vmatprep.subr.mxu0 0.0
    %130 = vmatpush1.xpose.msra.mxu0 0.0
    %131 = vmatprep.subr.mxu0 0.0
    %132 = vmatpush1.xpose.msra.mxu0 0.0
    %133 = vmatprep.subr.mxu0 0.0
    %134 = vmatpush1.xpose.msra.mxu0 0.0
    %135 = vmatprep.subr.mxu0 0.0
    %136 = vmatpush1.xpose.msra.mxu0 0.0
    %137 = vmatprep.subr.mxu0 0.0
    %138 = vmatpush1.xpose.msra.mxu0 0.0
    %139 = vmatprep.subr.mxu0 0.0
    %140 = vmatpush1.xpose.msra.mxu0 0.0
    %141 = vmatprep.subr.mxu0 0.0
    %142 = vmatpush1.xpose.msra.mxu0 0.0
    %143 = vmatprep.subr.mxu0 0.0
    %144 = vmatpush1.xpose.msra.mxu0 0.0
    %145 = vmatprep.subr.mxu0 0.0
    %146 = vmatpush1.xpose.msra.mxu0 0.0
    %147 = vmatprep.subr.mxu0 0.0
    %148 = vmatpush1.xpose.msra.mxu0 0.0
    %149 = vmatprep.subr.mxu0 0.0
    %150 = vmatpush1.xpose.msra.mxu0 0.0
    %151 = vmatprep.subr.mxu0 0.0
    %152 = vmatpush1.xpose.msra.mxu0 0.0
    %153 = vmatprep.subr.mxu0 0.0
    %154 = vmatpush1.xpose.msra.mxu0 0.0
    %155 = vmatprep.subr.mxu0 0.0
    %156 = vmatpush1.xpose.msra.mxu0 0.0
    %157 = vmatprep.subr.mxu0 0.0
    %158 = vmatpush1.xpose.msra.mxu0 0.0
    %159 = vmatprep.subr.mxu0 0.0
    %160 = vmatpush1.xpose.msra.mxu0 0.0
    %161 = vmatprep.subr.mxu0 0.0
    %162 = vmatpush1.xpose.msra.mxu0 0.0
    %163 = vmatprep.mubr.f32.mxu0 0.0
    %164 = vmatmul.mubr.f32.gmra.mrb[0].mxu0 %v85
    %v165 = vpop.f32.mrb[0].mxu0
    %v166 = vadd.f32 %v82, %v165
    %v167 = vpop.f32.mrb[0].mxu0
    %168 = vdwg.mxu0
    %v169 = vmul.f32 %v166, 0.2
    %v170 = vmax.f32 %v166, %v169
    %v171 = vld [vmem:[#allocation6] sm:$0xff]
    %v172 = vld [vmem:[#allocation6 + $0x8] sm:$0xff]
    %v173 = vld [vmem:[#allocation6 + $0x10] sm:$0xff]
    %v174 = vld [vmem:[#allocation6 + $0x18] sm:$0xff]
    %v176 = vsel %vm83, %v170, 0
    %v179 = vsel %vm83, %v171, 0
    %v182 = vsel %vm83, %v172, 0
    %v185 = vsel %vm83, %v173, 0
    %v188 = vsel %vm83, %v174, 0
    %190 = vmatprep.subr.mxu0 0.0
    %191 = vmatpush1.xpose.msra.mxu0 %v179
    %192 = vmatprep.subr.mxu0 0.0
    %193 = vmatpush1.xpose.msra.mxu0 %v182
    %194 = vmatprep.subr.mxu0 0.0
    %195 = vmatpush1.xpose.msra.mxu0 %v185
    %196 = vmatprep.subr.mxu0 0.0
    %197 = vmatpush1.xpose.msra.mxu0 %v188
    %198 = vmatprep.subr.mxu0 0.0
    %199 = vmatpush1.xpose.msra.mxu0 0.0
    %200 = vmatprep.subr.mxu0 0.0
    %201 = vmatpush1.xpose.msra.mxu0 0.0
    %202 = vmatprep.subr.mxu0 0.0
    %203 = vmatpush1.xpose.msra.mxu0 0.0
    %204 = vmatprep.subr.mxu0 0.0
    %205 = vmatpush1.xpose.msra.mxu0 0.0
    %206 = vmatprep.subr.mxu0 0.0
    %207 = vmatpush1.xpose.msra.mxu0 0.0
    %208 = vmatprep.subr.mxu0 0.0
    %209 = vmatpush1.xpose.msra.mxu0 0.0
    %210 = vmatprep.subr.mxu0 0.0
    %211 = vmatpush1.xpose.msra.mxu0 0.0
    %212 = vmatprep.subr.mxu0 0.0
    %213 = vmatpush1.xpose.msra.mxu0 0.0
    %214 = vmatprep.subr.mxu0 0.0
    %215 = vmatpush1.xpose.msra.mxu0 0.0
    %216 = vmatprep.subr.mxu0 0.0
    %217 = vmatpush1.xpose.msra.mxu0 0.0
    %218 = vmatprep.subr.mxu0 0.0
    %219 = vmatpush1.xpose.msra.mxu0 0.0
    %220 = vmatprep.subr.mxu0 0.0
    %221 = vmatpush1.xpose.msra.mxu0 0.0
    %222 = vmatprep.subr.mxu0 0.0
    %223 = vmatpush1.xpose.msra.mxu0 0.0
    %224 = vmatprep.subr.mxu0 0.0
    %225 = vmatpush1.xpose.msra.mxu0 0.0
    %226 = vmatprep.subr.mxu0 0.0
    %227 = vmatpush1.xpose.msra.mxu0 0.0
    %228 = vmatprep.subr.mxu0 0.0
    %229 = vmatpush1.xpose.msra.mxu0 0.0
    %230 = vmatprep.subr.mxu0 0.0
    %231 = vmatpush1.xpose.msra.mxu0 0.0
    %232 = vmatprep.subr.mxu0 0.0
    %233 = vmatpush1.xpose.msra.mxu0 0.0
    %234 = vmatprep.subr.mxu0 0.0
    %235 = vmatpush1.xpose.msra.mxu0 0.0
    %236 = vmatprep.subr.mxu0 0.0
    %237 = vmatpush1.xpose.msra.mxu0 0.0
    %238 = vmatprep.subr.mxu0 0.0
    %239 = vmatpush1.xpose.msra.mxu0 0.0
    %240 = vmatprep.subr.mxu0 0.0
    %241 = vmatpush1.xpose.msra.mxu0 0.0
    %242 = vmatprep.subr.mxu0 0.0
    %243 = vmatpush1.xpose.msra.mxu0 0.0
    %244 = vmatprep.subr.mxu0 0.0
    %245 = vmatpush1.xpose.msra.mxu0 0.0
    %246 = vmatprep.subr.mxu0 0.0
    %247 = vmatpush1.xpose.msra.mxu0 0.0
    %248 = vmatprep.subr.mxu0 0.0
    %249 = vmatpush1.xpose.msra.mxu0 0.0
    %250 = vmatprep.subr.mxu0 0.0
    %251 = vmatpush1.xpose.msra.mxu0 0.0
    %252 = vmatprep.subr.mxu0 0.0
    %253 = vmatpush1.xpose.msra.mxu0 0.0
    %254 = vmatprep.mubr.f32.mxu0 0.0
    %255 = vmatmul.mubr.f32.gmra.mrb[0].mxu0 %v176
    %v256 = vpop.f32.mrb[0].mxu0
    %v257 = vadd.f32 0.0, %v256
    %v258 = vpop.f32.mrb[0].mxu0
    %259 = vdwg.mxu0
    %v260 = vsel %vm83, %v257, 0.0
    %v261 = vrot.slane %v260, 4
    %v262 = vadd.f32 %v260, %v261
    %v263 = vrot.slane %v262, 2
    %v264 = vadd.f32 %v262, %v263
    %v265 = vrot.slane %v264, 1
    %v266 = vadd.f32 %v264, %v265
    %v267 = vmul.f32 %v257, %v257
    %v268 = vsel %vm83, %v267, 0.0
    %v269 = vrot.slane %v268, 4
    %v270 = vadd.f32 %v268, %v269
    %v271 = vrot.slane %v270, 2
    %v272 = vadd.f32 %v270, %v271
    %v273 = vrot.slane %v272, 1
    %v274 = vadd.f32 %v272, %v273
    %v275 = vmul.f32 %v266, 0.125
    %v276 = vmul.f32 %v274, 0.125
    %v277 = vmul.f32 %v275, %v275
    %v278 = vsub.f32 %v276, %v277
    %v279 = vadd.f32 %v278, 1e-05
    %v280 = vrsqrt.pop %v279
    %v281 = vmul.f32 %v74, %v280
    %v282 = vmul.f32 %v275, %v281
    %v284 = vrot.slane %v282, 7
    %v286 = vsub.f32 %v74, %v284
    %v287 = vlaneseq
    %v288 = vshrl.u32 %v287, 7
    %v289 = vsub.s32 1, %v288
    %v290 = vrot.slane %v281, %v289
    %v291 = vmul.f32 %v257, %v290
    %v292 = vlaneseq
    %v293 = vshrl.u32 %v292, 7
    %v294 = vsub.s32 2, %v293
    %v295 = vrot.slane %v286, %v294
    %v296 = vadd.f32 %v291, %v295
    %v297 = vmul.f32 %v296, 0.2
    %v298 = vmax.f32 %v296, %v297
    %v299 = vld [vmem:[#allocation7] sm:$0xff]
    %v300 = vld [vmem:[#allocation7 + $0x8] sm:$0xff]
    %v301 = vld [vmem:[#allocation7 + $0x10] sm:$0xff]
    %v302 = vld [vmem:[#allocation7 + $0x18] sm:$0xff]
    %v304 = vsel %vm83, %v298, 0
    %v307 = vsel %vm83, %v299, 0
    %v310 = vsel %vm83, %v300, 0
    %v313 = vsel %vm83, %v301, 0
    %v316 = vsel %vm83, %v302, 0
    %318 = vmatprep.subr.mxu0 0.0
    %319 = vmatpush1.xpose.msra.mxu0 %v307
    %320 = vmatprep.subr.mxu0 0.0
    %321 = vmatpush1.xpose.msra.mxu0 %v310
    %322 = vmatprep.subr.mxu0 0.0
    %323 = vmatpush1.xpose.msra.mxu0 %v313
    %324 = vmatprep.subr.mxu0 0.0
    %325 = vmatpush1.xpose.msra.mxu0 %v316
    %326 = vmatprep.subr.mxu0 0.0
    %327 = vmatpush1.xpose.msra.mxu0 0.0
    %328 = vmatprep.subr.mxu0 0.0
    %329 = vmatpush1.xpose.msra.mxu0 0.0
    %330 = vmatprep.subr.mxu0 0.0
    %331 = vmatpush1.xpose.msra.mxu0 0.0
    %332 = vmatprep.subr.mxu0 0.0
    %333 = vmatpush1.xpose.msra.mxu0 0.0
    %334 = vmatprep.subr.mxu0 0.0
    %335 = vmatpush1.xpose.msra.mxu0 0.0
    %336 = vmatprep.subr.mxu0 0.0
    %337 = vmatpush1.xpose.msra.mxu0 0.0
    %338 = vmatprep.subr.mxu0 0.0
    %339 = vmatpush1.xpose.msra.mxu0 0.0
    %340 = vmatprep.subr.mxu0 0.0
    %341 = vmatpush1.xpose.msra.mxu0 0.0
    %342 = vmatprep.subr.mxu0 0.0
    %343 = vmatpush1.xpose.msra.mxu0 0.0
    %344 = vmatprep.subr.mxu0 0.0
    %345 = vmatpush1.xpose.msra.mxu0 0.0
    %346 = vmatprep.subr.mxu0 0.0
    %347 = vmatpush1.xpose.msra.mxu0 0.0
    %348 = vmatprep.subr.mxu0 0.0
    %349 = vmatpush1.xpose.msra.mxu0 0.0
    %350 = vmatprep.subr.mxu0 0.0
    %351 = vmatpush1.xpose.msra.mxu0 0.0
    %352 = vmatprep.subr.mxu0 0.0
    %353 = vmatpush1.xpose.msra.mxu0 0.0
    %354 = vmatprep.subr.mxu0 0.0
    %355 = vmatpush1.xpose.msra.mxu0 0.0
    %356 = vmatprep.subr.mxu0 0.0
    %357 = vmatpush1.xpose.msra.mxu0 0.0
    %358 = vmatprep.subr.mxu0 0.0
    %359 = vmatpush1.xpose.msra.mxu0 0.0
    %360 = vmatprep.subr.mxu0 0.0
    %361 = vmatpush1.xpose.msra.mxu0 0.0
    %362 = vmatprep.subr.mxu0 0.0
    %363 = vmatpush1.xpose.msra.mxu0 0.0
    %364 = vmatprep.subr.mxu0 0.0
    %365 = vmatpush1.xpose.msra.mxu0 0.0
    %366 = vmatprep.subr.mxu0 0.0
    %367 = vmatpush1.xpose.msra.mxu0 0.0
    %368 = vmatprep.subr.mxu0 0.0
    %369 = vmatpush1.xpose.msra.mxu0 0.0
    %370 = vmatprep.subr.mxu0 0.0
    %371 = vmatpush1.xpose.msra.mxu0 0.0
    %372 = vmatprep.subr.mxu0 0.0
    %373 = vmatpush1.xpose.msra.mxu0 0.0
    %374 = vmatprep.subr.mxu0 0.0
    %375 = vmatpush1.xpose.msra.mxu0 0.0
    %376 = vmatprep.subr.mxu0 0.0
    %377 = vmatpush1.xpose.msra.mxu0 0.0
    %378 = vmatprep.subr.mxu0 0.0
    %379 = vmatpush1.xpose.msra.mxu0 0.0
    %380 = vmatprep.subr.mxu0 0.0
    %381 = vmatpush1.xpose.msra.mxu0 0.0
    %382 = vmatprep.mubr.f32.mxu0 0.0
    %383 = vmatmul.mubr.f32.gmra.mrb[0].mxu0 %v304
    %v384 = vpop.f32.mrb[0].mxu0
    %v385 = vadd.f32 0.0, %v384
    %v386 = vpop.f32.mrb[0].mxu0
    %387 = vdwg.mxu0
    %v388 = vsel %vm83, %v385, 0.0
    %v389 = vrot.slane %v388, 4
    %v390 = vadd.f32 %v388, %v389
    %v391 = vrot.slane %v390, 2
    %v392 = vadd.f32 %v390, %v391
    %v393 = vrot.slane %v392, 1
    %v394 = vadd.f32 %v392, %v393
    %v395 = vmul.f32 %v385, %v385
    %v396 = vsel %vm83, %v395, 0.0
    %v397 = vrot.slane %v396, 4
    %v398 = vadd.f32 %v396, %v397
    %v399 = vrot.slane %v398, 2
    %v400 = vadd.f32 %v398, %v399
    %v401 = vrot.slane %v400, 1
    %v402 = vadd.f32 %v400, %v401
    %v403 = vmul.f32 %v394, 0.125
    %v404 = vmul.f32 %v402, 0.125
    %v405 = vmul.f32 %v403, %v403
    %v406 = vsub.f32 %v404, %v405
    %v407 = vadd.f32 %v406, 1e-05
    %v408 = vrsqrt.pop %v407
    %v409 = vmul.f32 %v74, %v408
    %v410 = vmul.f32 %v403, %v409
    %v412 = vrot.slane %v410, 7
    %v414 = vsub.f32 %v74, %v412
    %v415 = vlaneseq
    %v416 = vshrl.u32 %v415, 7
    %v417 = vsub.s32 3, %v416
    %v418 = vrot.slane %v409, %v417
    %v419 = vmul.f32 %v385, %v418
    %v420 = vlaneseq
    %v421 = vshrl.u32 %v420, 7
    %v422 = vsub.s32 4, %v421
    %v423 = vrot.slane %v414, %v422
    %v424 = vadd.f32 %v419, %v423
    %v425 = vmul.f32 %v424, 0.2
    %v426 = vmax.f32 %v424, %v425
    %v427 = vlaneseq
    %v428 = vshrl.u32 %v427, 7
    %v429 = vsub.s32 5, %v428
    %v430 = vrot.slane %v74, %v429
    %v431 = vmul.f32 %v426, %v430
    %v432 = vsel %vm83, %v431, 0.0
    %433 = vadd.xlane.f32.xlu0 %v432
    %v434 = vpop.xlane.xlu0 %433
    %v435 = vlaneseq
    %v436 = vshrl.u32 %v435, 7
    %v437 = vsub.s32 6, %v436
    %v438 = vrot.slane %v74, %v437
    %v439 = vadd.f32 %v434, %v438
    %vm440 = vcmask 7168
    %441 = vst.msk [vmem:[%s5] sm:$0xff] %vm440, %v439
    // Predicated region
    $region38: #{tpu_custom_call.1} parent=1 // pred_check
      _
    $region39: #{tpu_custom_call.1} parent=1 // pred_check_branch
      %443 = sbr.rel (0) target = $region41
    $region40: #{tpu_custom_call.1} parent=1 // pred_region
      _
    $region41: #{tpu_custom_call.1} parent=1 // pred_fallthru
      _
    // Predicated region
    $region42: #{tpu_custom_call.1} parent=1 // pred_check
      _
    $region43: #{tpu_custom_call.1} parent=1 // pred_check_branch
      %445 = sbr.rel (0) target = $region45
    $region44: #{tpu_custom_call.1} parent=1 // pred_region
      _
    $region45: #{tpu_custom_call.1} parent=1 // pred_fallthru
      _
    %446 = vsyncpa [#allocation3], 1
    %447 = vsyncpa [#allocation5], 1
    %448 = vsyncpa [#allocation8], 1

</llo_original>
